<compile_context>
chip_gen: v7x
topology: tpu7x:2x2x1
jax: 0.10.0
libtpu: 0.0.40
codegen_flags: <defaults>
</compile_context>

<pallas_src>
import functools

import jax
import jax.numpy as jnp
from jax.experimental import pallas as pl
from jax.experimental.pallas import tpu as pltpu


def _pixel_shuffle_kernel(x_ref, o_ref, *, upscale_factor, long_channel, sl_block):
    """x_ref: (C, bsl, W) ; o_ref: (LC, U*bsl, W)  (batch dim squeezed by BlockSpec).

    For channel group u, input rows j land on output rows j*U + u: one
    sublane-strided store per group, straight into the final-layout output
    block.  No intermediate VMEM copies, no concatenate.
    """
    U = upscale_factor
    LC = long_channel
    bsl = sl_block
    for u in range(U):  # U is small & static -> unrolled
        o_ref[:, pl.ds(u, bsl, stride=U), :] = x_ref[u * LC:(u + 1) * LC, :, :]


def _round_up(v, m):
    return -(-v // m) * m


def _vmem_budget_and_limit():
    """(per-step block budget, requested scoped-VMEM limit), chip-aware."""
    cap = None
    try:
        cap = getattr(pltpu.get_tpu_info(), "vmem_capacity_bytes", None)
    except Exception:  # query may fail off-TPU / on older runtimes
        cap = None
    if not cap:
        cap = 64 * 1024 * 1024  # conservative (v7x-sized) default
    budget = min(cap // 4, 32 * 1024 * 1024)       # double-buffered in+out blocks
    limit = min((cap * 3) // 4, 96 * 1024 * 1024)  # scoped VMEM limit we request
    return int(budget), int(limit)


def _pick_sl_block(B, SL, C, LC, U, W, itemsize, budget):
    """Largest SL tile whose padded, double-buffered blocks fit the budget,
    preferring >= 4 grid points (megacore sharding / pipeline overlap)."""
    sub = max(8, 32 // itemsize)          # sublane packing: f32->8, bf16->16, int8->32
    lanes = _round_up(W, 128)             # lane padding of the trailing dim

    def fits(bsl):
        in_rows = _round_up(bsl, sub)
        out_rows = _round_up(U * bsl, sub)
        # x2: both the input and the output block are double-buffered.
        return 2 * itemsize * lanes * (C * in_rows + LC * out_rows) <= budget

    cands = [d for d in range(sub, SL + 1, sub) if SL % d == 0]
    if SL not in cands:
        cands.append(SL)                  # full dim is always a legal block shape
    cands = sorted(set(cands))

    fitting = [d for d in cands if fits(d)]
    pool = fitting if fitting else cands[:1]   # fallback: smallest legal tile
    bsl = max(pool)
    if B * (SL // bsl) < 4:               # try to give both v7x cores work
        for d in sorted(pool, reverse=True):
            if B * (SL // d) >= 4 and d * 4 >= bsl:   # never shrink more than 4x
                bsl = d
                break
    return bsl


def pixel_shuffle_pallas(x, upscale_factor):
    """x: (B, C, SL, W) -> (B, C//U, U*SL, W), identical to the PyTorch module."""
    B, C, SL, W = x.shape
    U = int(upscale_factor)
    if C % U != 0:
        raise ValueError(f"channels {C} not divisible by upscale_factor {U}")
    if U == 1:
        return x                           # identity: skip the HBM round trip
    LC = C // U

    itemsize = jnp.dtype(x.dtype).itemsize
    budget, vmem_limit = _vmem_budget_and_limit()
    bsl = _pick_sl_block(B, SL, C, LC, U, W, itemsize, budget)
    grid = (B, SL // bsl)

    kernel = functools.partial(
        _pixel_shuffle_kernel,
        upscale_factor=U, long_channel=LC, sl_block=bsl)

    return pl.pallas_call(
        kernel,
        out_shape=jax.ShapeDtypeStruct((B, LC, U * SL, W), x.dtype),
        grid=grid,
        in_specs=[pl.BlockSpec((None, C, bsl, W), lambda b, s: (b, 0, s, 0))],
        out_specs=pl.BlockSpec((None, LC, U * bsl, W), lambda b, s: (b, 0, s, 0)),
        compiler_params=pltpu.CompilerParams(
            dimension_semantics=("parallel", "parallel"),
            vmem_limit_bytes=vmem_limit),
    )(x)


pixel_shuffle = jax.jit(pixel_shuffle_pallas, static_argnums=1)


def pixel_shuffle_reference(x, upscale_factor):
    """Plain-JAX mirror of the PyTorch view/permute/view chain."""
    B, C, SL, W = x.shape
    U = int(upscale_factor)
    LC = C // U
    y = x.reshape(B, U, LC, SL, W)
    y = jnp.transpose(y, (0, 2, 3, 1, 4))
    return y.reshape(B, LC, U * SL, W)


if __name__ == "__main__":
    key = jax.random.PRNGKey(0)

    # Primary small config (matches the module's intended test shape).
    B, C, SL, W, U = 2, 4, 16, 16, 2
    x = jax.random.normal(key, (B, C, SL, W), jnp.float32)
    out = jax.block_until_ready(pixel_shuffle(x, U))
    ref = pixel_shuffle_reference(x, U)
    assert out.shape == (B, C // U, U * SL, W), out.shape
    assert bool(jnp.all(out == ref)), float(jnp.max(jnp.abs(out - ref)))

    # Second small config: larger upscale factor (stride-4 stores).
    B2, C2, SL2, W2, U2 = 1, 8, 16, 16, 4
    x2 = jax.random.normal(jax.random.PRNGKey(0), (B2, C2, SL2, W2), jnp.float32)
    out2 = jax.block_until_ready(pixel_shuffle(x2, U2))
    ref2 = pixel_shuffle_reference(x2, U2)
    assert out2.shape == (B2, C2 // U2, U2 * SL2, W2), out2.shape
    assert bool(jnp.all(out2 == ref2)), float(jnp.max(jnp.abs(out2 - ref2)))

    # Degenerate U == 1 short-circuit (identity).
    out3 = jax.block_until_ready(pixel_shuffle(x, 1))
    assert bool(jnp.all(out3 == x))

    print("KERNEL_OK")
</pallas_src>

<mosaic_0001>
module attributes {stable_mosaic.version = 11 : i64} {
  func.func @_pixel_shuffle_kernel(%arg0: i32, %arg1: i32, %arg2: memref<1x4x8x16xf32, #tpu.memory_space<vmem>>, %arg3: memref<1x2x16x16xf32, #tpu.memory_space<vmem>>) attributes {dimension_semantics = [#tpu.dimension_semantics<parallel>, #tpu.dimension_semantics<parallel>], iteration_bounds = array<i64: 2, 2>, scalar_prefetch = 0 : i64, scratch_operands = 0 : i64, tpu.core_type = #tpu.core_type<tc>, window_params = [{transform_indices = @transform_0, window_bounds = array<i64: 1, 4, 8, 16>}, {transform_indices = @transform_1, window_bounds = array<i64: 1, 2, 16, 16>}]} {
    %c0 = arith.constant 0 : index
    %c0_0 = arith.constant 0 : index
    %c0_1 = arith.constant 0 : index
    %c0_2 = arith.constant 0 : index
    %0 = vector.load %arg2[%c0, %c0_0, %c0_1, %c0_2] : memref<1x4x8x16xf32, #tpu.memory_space<vmem>>, vector<1x2x8x16xf32>
    %1 = vector.shape_cast %0 : vector<1x2x8x16xf32> to vector<2x8x16xf32>
    %c0_3 = arith.constant 0 : index
    %c0_4 = arith.constant 0 : index
    %c0_5 = arith.constant 0 : index
    %c0_6 = arith.constant 0 : index
    %2 = tpu.strided_load %arg3[%c0_3, %c0_4, %c0_5, %c0_6] {strides = array<i32: 1, 1, 2, 1>} : memref<1x2x16x16xf32, #tpu.memory_space<vmem>>, vector<1x2x8x16xf32>
    %3 = vector.shape_cast %2 : vector<1x2x8x16xf32> to vector<2x8x16xf32>
    %4 = vector.shape_cast %1 : vector<2x8x16xf32> to vector<1x2x8x16xf32>
    tpu.strided_store %arg3[%c0_3, %c0_4, %c0_5, %c0_6], %4 {strides = array<i32: 1, 1, 2, 1>} : memref<1x2x16x16xf32, #tpu.memory_space<vmem>>, vector<1x2x8x16xf32>
    %c0_7 = arith.constant 0 : index
    %c2 = arith.constant 2 : index
    %c0_8 = arith.constant 0 : index
    %c0_9 = arith.constant 0 : index
    %5 = vector.load %arg2[%c0_7, %c2, %c0_8, %c0_9] : memref<1x4x8x16xf32, #tpu.memory_space<vmem>>, vector<1x2x8x16xf32>
    %6 = vector.shape_cast %5 : vector<1x2x8x16xf32> to vector<2x8x16xf32>
    %c0_10 = arith.constant 0 : index
    %c0_11 = arith.constant 0 : index
    %c1 = arith.constant 1 : index
    %c0_12 = arith.constant 0 : index
    %7 = tpu.strided_load %arg3[%c0_10, %c0_11, %c1, %c0_12] {strides = array<i32: 1, 1, 2, 1>} : memref<1x2x16x16xf32, #tpu.memory_space<vmem>>, vector<1x2x8x16xf32>
    %8 = vector.shape_cast %7 : vector<1x2x8x16xf32> to vector<2x8x16xf32>
    %9 = vector.shape_cast %6 : vector<2x8x16xf32> to vector<1x2x8x16xf32>
    tpu.strided_store %arg3[%c0_10, %c0_11, %c1, %c0_12], %9 {strides = array<i32: 1, 1, 2, 1>} : memref<1x2x16x16xf32, #tpu.memory_space<vmem>>, vector<1x2x8x16xf32>
    return
  }
  func.func @transform_0(%arg0: i32, %arg1: i32) -> (i32, i32, i32, i32) {
    %c0_i32 = arith.constant 0 : i32
    %c0_i32_0 = arith.constant 0 : i32
    %c0_i32_1 = arith.constant 0 : i32
    return %arg0, %c0_i32, %arg1, %c0_i32_0 : i32, i32, i32, i32
  }
  func.func @transform_1(%arg0: i32, %arg1: i32) -> (i32, i32, i32, i32) {
    %c0_i32 = arith.constant 0 : i32
    %c0_i32_0 = arith.constant 0 : i32
    %c0_i32_1 = arith.constant 0 : i32
    return %arg0, %c0_i32, %arg1, %c0_i32_0 : i32, i32, i32, i32
  }
}

</mosaic_0001>

<llo_original>
// kernel: pixel_shuffle_pallas.1
$region0: #{pixel_shuffle_pallas.1}
  #allocation0 [shape = 'u32[]', space=smem, size = 0x4, offset = 0x4, fixed_abs, tag = 'smem constant byte address 0x4 - core index']
  #allocation1 [shape = 'u32[144,128]{1,0:T(1,128)}', space=vmem, size = 0x12000, scoped, tag = 'internal scratch']
  %s0 = inlined_call_operand.hbm [shape: f32[2,4,16,16], index: 0, kind: input, shape index: {}]
  %s1 = inlined_call_operand.vmem [shape: f32[2,2,32,16], index: 1, kind: output, shape index: {}]
  %s2 = sld [smem:[#allocation0]]
  $region75: #{pixel_shuffle_pallas.1} parent=0
    _
  %s4 = ssub.s32 1, %s2
  %s5 = scalar_select 0, %s4, %s2
  $region1: #{pixel_shuffle_pallas.1} parent=0
    #allocation2 [shape = 'u8[32768]{0}', space=vmem, size = 0x8000, scoped, tag = 'input window, operand 0']
    #allocation3 [shape = 's32[2]{0}', space=sflag, size = 0x8, scoped, tag = 'scoped memory for pixel_shuffle_pallas.1']
    #allocation4 [shape = 'u8[32768]{0}', space=vmem, size = 0x8000, scoped, tag = 'output window, operand 0']
    %6 = vsyncpa [#allocation3], 0
    %s7 = scalar_lea.sflag [#allocation3], 1
    %8 = vsyncpa %s7, 0
    loop: start=0, step=1, limit=6
    $region2: #{pixel_shuffle_pallas.1} parent=1 // loop_pre_header
      _
    $region3: #{pixel_shuffle_pallas.1} parent=1 // loop_header
      %s10 = sphi 0, %s14
      %p11 = scmp.ge.s32.totalorder %s10, 6
      %s17 = sphi 0, %s29
      %s18 = sphi 0, %s25
      %s19 = sphi 0, %s17
      %s20 = sphi 0, %s18
      %s21 = sphi 0, %s19
      %s22 = sphi 0, %s20
      %s34 = sphi 0, %s36
      %s37 = sphi 0, %s34
      %s38 = sphi 0, %s37
      %s54 = sphi 0, %s38
      %s62 = sphi 0, %s64
      %s65 = sphi 0, %s62
      %s66 = sphi 0, %s65
      %s82 = sphi 0, %s66
    $region4: #{pixel_shuffle_pallas.1} parent=1 // loop_header_branch
      %13 = sbr.rel (%p11) target = $region8
    $region5: #{pixel_shuffle_pallas.1} parent=1 // loop_body
      %s15 = ssub.s32 %s10, 1
      %s16 = ssub.s32 %s10, 2
      %s23 = sadd.s32 1, %s18
      %p24 = scmp.ge.s32.totalorder %s23, 2
      %s25 = scalar_select %p24, 0, %s23
      %s26 = sadd.s32 1, %s17
      %s27 = scalar_select %p24, %s26, %s17
      %p28 = scmp.ge.s32.totalorder %s27, 2
      %s29 = scalar_select %p28, 0, %s27
      %s30 = ssub.s32 %s17, %s29
      %s31 = ssub.s32 %s18, %s25
      %s32 = sor.u32 %s30, %s31
      %p33 = scmp.eq.s32.totalorder %s32, 0
      %s35 = sadd.s32 %s34, 1
      %s36 = scalar_select %p33, %s34, %s35
      %p39 = pneg %p33
      %p40 = scmp.eq.s32.totalorder %s10, 3
      %p41 = por %p39, %p40
      %p42 = scmp.ne.s32.totalorder %s34, %s37
      %p43 = scmp.eq.s32.totalorder %s10, 0
      %p44 = por %p42, %p43
      %p45 = scmp.ne.s32.totalorder %s34, %s37
      %p46 = scmp.eq.s32.totalorder %s15, 3
      %p47 = por %p45, %p46
      %p48 = scmp.ne.s32.totalorder %s37, %s38
      %p49 = scmp.eq.s32.totalorder %s15, 0
      %p50 = por %p48, %p49
      %p51 = scmp.ne.s32.totalorder %s37, %s38
      %p52 = scmp.eq.s32.totalorder %s16, 3
      %p53 = por %p51, %p52
      %p55 = scmp.ne.s32.totalorder %s38, %s54
      %p56 = scmp.eq.s32.totalorder %s16, 0
      %p57 = por %p55, %p56
      %s58 = ssub.s32 %s17, %s29
      %s59 = ssub.s32 %s18, %s25
      %s60 = sor.u32 %s58, %s59
      %p61 = scmp.eq.s32.totalorder %s60, 0
      %s63 = sadd.s32 %s62, 1
      %s64 = scalar_select %p61, %s62, %s63
      %p67 = pneg %p61
      %p68 = scmp.eq.s32.totalorder %s10, 3
      %p69 = por %p67, %p68
      %p70 = scmp.ne.s32.totalorder %s62, %s65
      %p71 = scmp.eq.s32.totalorder %s10, 0
      %p72 = por %p70, %p71
      %p73 = scmp.ne.s32.totalorder %s62, %s65
      %p74 = scmp.eq.s32.totalorder %s15, 3
      %p75 = por %p73, %p74
      %p76 = scmp.ne.s32.totalorder %s65, %s66
      %p77 = scmp.eq.s32.totalorder %s15, 0
      %p78 = por %p76, %p77
      %p79 = scmp.ne.s32.totalorder %s65, %s66
      %p80 = scmp.eq.s32.totalorder %s16, 3
      %p81 = por %p79, %p80
      %p83 = scmp.ne.s32.totalorder %s66, %s82
      %p84 = scmp.eq.s32.totalorder %s16, 0
      %p85 = por %p83, %p84
      %p86 = scmp.le.s32.totalorder 1, %s10
      %p87 = scmp.lt.s32.totalorder %s10, 5
      %p88 = pnand %p86, %p87
      %p89 = pneg %p88
      // Predicated region
      $region9: #{pixel_shuffle_pallas.1} parent=5 // pred_check
        _
      $region10: #{pixel_shuffle_pallas.1} parent=5 // pred_check_branch
        %91 = sbr.rel (%p88) target = $region12
      $region11: #{pixel_shuffle_pallas.1} parent=5 // pred_region
        %s92 = ssub.s32 %s10, 1
      $region12: #{pixel_shuffle_pallas.1} parent=5 // pred_fallthru
        _
      %p93 = scmp.lt.s32.totalorder %s10, 4
      // Predicated region
      $region13: #{pixel_shuffle_pallas.1} parent=5 // pred_check
        %p94 = pneg %p93
      $region14: #{pixel_shuffle_pallas.1} parent=5 // pred_check_branch
        %96 = sbr.rel (%p94) target = $region16
      $region15: #{pixel_shuffle_pallas.1} parent=5 // pred_region
        // Predicated region
        $region17: #{pixel_shuffle_pallas.1} parent=15 // pred_check
          %p97 = pneg %p44
        $region18: #{pixel_shuffle_pallas.1} parent=15 // pred_check_branch
          %99 = sbr.rel (%p97) target = $region20
        $region19: #{pixel_shuffle_pallas.1} parent=15 // pred_region
          %s100 = sand.u32 %s34, 1
          %s101 = scalar_lea.sflag [#allocation3], %s100
          %s102 = sand.u32 %s34, 1
          %s103 = smul.addr %s102, 32
          %s104 = scalar_lea.vmem [#allocation2], %s103
          %s106 = ssub.s32 512, 512
          %107 = vsyncadd %s101, %s106
          %s108 = smul.addr %s17, 8
          %s109 = sadd.s32 %s18, %s108
          %s110 = smul.addr %s109, 128
          %s111 = scalar_lea.hbm %s0, %s110
          %s112 = sshll.u32 %s104, 4
          %s113 = int_to_ptr.vmem [resolvable:$true] %s112
          %118 = dma.hbm_to_vmem [thread:$0]  %s111, 512, %s113, %s101, 256, 128, 8
        $region20: #{pixel_shuffle_pallas.1} parent=15 // pred_fallthru
          _
      $region16: #{pixel_shuffle_pallas.1} parent=5 // pred_fallthru
        _
      %p119 = scmp.le.s32.totalorder 1, %s10
      %p120 = scmp.lt.s32.totalorder %s10, 5
      %p121 = pnand %p119, %p120
      %p122 = pneg %p121
      // Predicated region
      $region21: #{pixel_shuffle_pallas.1} parent=5 // pred_check
        _
      $region22: #{pixel_shuffle_pallas.1} parent=5 // pred_check_branch
        %124 = sbr.rel (%p121) target = $region24
      $region23: #{pixel_shuffle_pallas.1} parent=5 // pred_region
        %s125 = ssub.s32 %s10, 1
        %s126 = sand.u32 %s37, 1
        %s127 = scalar_lea.sflag [#allocation3], %s126
        %s128 = sand.u32 %s37, 1
        %s129 = smul.addr %s128, 32
        %s130 = scalar_lea.vmem [#allocation2], %s129
        // Predicated region
        $region25: #{pixel_shuffle_pallas.1} parent=23 // pred_check
          %p131 = pneg %p50
        $region26: #{pixel_shuffle_pallas.1} parent=23 // pred_check_branch
          %133 = sbr.rel (%p131) target = $region28
        $region27: #{pixel_shuffle_pallas.1} parent=23 // pred_region
          %134 = dma.done %s127, 512
        $region28: #{pixel_shuffle_pallas.1} parent=23 // pred_fallthru
          _
        %s135 = sand.u32 %s37, 1
        %s136 = scalar_lea.sflag [#allocation3], %s135
        %s137 = sand.u32 %s37, 1
        %s138 = smul.addr %s137, 32
        %s139 = scalar_lea.vmem [#allocation2], %s138
        %p140 = pneg %p50
        %p141 = pneg %p47
        %p142 = pneg %p78
        %p143 = pneg %p75
        %s144 = sand.u32 %s65, 1
        %s145 = sand.u32 %s65, 1
        %s146 = smul.addr %s145, 32
        %s147 = scalar_lea.vmem [#allocation4], %s146
        %s148 = smul.u32 2, %s20
        %v149 = vld [vmem:[%s130] sm:$0xff]
        %v150 = vld [vmem:[%s130 + $0x8] sm:$0xff]
        %151 = vst [vmem:[%s147] ss:$2 sm:$0xff] %v149
        %s152 = scalar_lea.vmem %s147, 16 [#allocation4]
        %153 = vst [vmem:[%s152] ss:$2 sm:$0xff] %v150
        %s154 = scalar_lea.vmem %s130, 16 [#allocation2]
        %v155 = vld [vmem:[%s154] sm:$0xff]
        %v156 = vld [vmem:[%s154 + $0x8] sm:$0xff]
        %s157 = scalar_lea.vmem %s147, 1 [#allocation4]
        %158 = vst [vmem:[%s157] ss:$2 sm:$0xff] %v155
        %s159 = scalar_lea.vmem %s147, 17 [#allocation4]
        %160 = vst [vmem:[%s159] ss:$2 sm:$0xff] %v156
        %s161 = sand.u32 %s65, 1
        %s162 = sand.u32 %s65, 1
        %s163 = smul.addr %s162, 32
        %s164 = scalar_lea.vmem [#allocation4], %s163
        // Predicated region
        $region29: #{pixel_shuffle_pallas.1} parent=23 // pred_check
          %p165 = pneg %p75
        $region30: #{pixel_shuffle_pallas.1} parent=23 // pred_check_branch
          %167 = sbr.rel (%p165) target = $region32
        $region31: #{pixel_shuffle_pallas.1} parent=23 // pred_region
          %s168 = smul.u32 2, %s20
          %s169 = smul.addr %s19, 8
          %s170 = sadd.s32 %s168, %s169
          %s171 = smul.addr %s170, 8
          %s172 = scalar_lea.vmem %s1, %s171
          // Predicated region
          $region33: #{pixel_shuffle_pallas.1} parent=31 // pred_check
            _
          $region34: #{pixel_shuffle_pallas.1} parent=31 // pred_check_branch
            %174 = sbr.rel (0) target = $region36
          $region35: #{pixel_shuffle_pallas.1} parent=31 // pred_region
            // Predicated region
            $region37: #{pixel_shuffle_pallas.1} parent=35 // pred_check
              _
            $region38: #{pixel_shuffle_pallas.1} parent=35 // pred_check_branch
              %176 = sbr.rel (0) target = $region40
            $region39: #{pixel_shuffle_pallas.1} parent=35 // pred_region
              // Predicated region
              $region52: #{pixel_shuffle_pallas.1} parent=39 // pred_check
                _
              $region53: #{pixel_shuffle_pallas.1} parent=39 // pred_check_branch
                %197 = sbr.rel (0) target = $region55
              $region54: #{pixel_shuffle_pallas.1} parent=39 // pred_region
                loop: start=0, step=1, limit=1
                $region56: #{pixel_shuffle_pallas.1} parent=54 // loop_pre_header
                  _
                $region57: #{pixel_shuffle_pallas.1} parent=54 // loop_header
                  %s199 = sphi 0, %s203
                  %p200 = scmp.ge.s32.totalorder %s199, 1
                  %s204 = sphi %s164, %s164
                  %s205 = sphi %s172, %s172
                $region58: #{pixel_shuffle_pallas.1} parent=54 // loop_header_branch
                  %202 = sbr.rel (%p200) target = $region62
                $region59: #{pixel_shuffle_pallas.1} parent=54 // loop_body
                  %v206 = vld [vmem:[%s204] sm:$0xff]
                  %207 = vst [vmem:[%s205] sm:$0xff] %v206
                  %v208 = vld [vmem:[%s204 + $0x8] sm:$0xff]
                  %209 = vst [vmem:[%s205 + $0x8] sm:$0xff] %v208
                  %v210 = vld [vmem:[%s204 + $0x10] sm:$0xff]
                  %211 = vst [vmem:[%s205 + $0x20] sm:$0xff] %v210
                  %v212 = vld [vmem:[%s204 + $0x18] sm:$0xff]
                  %213 = vst [vmem:[%s205 + $0x28] sm:$0xff] %v212
                $region60: #{pixel_shuffle_pallas.1} parent=54 // loop_footer
                  %s203 = sadd.s32 1, %s199
                $region61: #{pixel_shuffle_pallas.1} parent=54 // loop_footer_branch
                  %198 = sbr.rel target = $region57
                $region62: #{pixel_shuffle_pallas.1} parent=54 // loop_exit
                  _
              $region55: #{pixel_shuffle_pallas.1} parent=39 // pred_fallthru
                _
              // Predicated region
              $region63: #{pixel_shuffle_pallas.1} parent=39 // pred_check
                _
              $region64: #{pixel_shuffle_pallas.1} parent=39 // pred_check_branch
                %215 = sbr.rel target = $region66
              $region65: #{pixel_shuffle_pallas.1} parent=39 // pred_region
                _
              $region66: #{pixel_shuffle_pallas.1} parent=39 // pred_fallthru
                _
            $region40: #{pixel_shuffle_pallas.1} parent=35 // pred_fallthru
              _
            // Predicated region
            $region41: #{pixel_shuffle_pallas.1} parent=35 // pred_check
              _
            $region42: #{pixel_shuffle_pallas.1} parent=35 // pred_check_branch
              %178 = sbr.rel target = $region44
            $region43: #{pixel_shuffle_pallas.1} parent=35 // pred_region
              loop: start=0, step=1, limit=1
              $region45: #{pixel_shuffle_pallas.1} parent=43 // loop_pre_header
                _
              $region46: #{pixel_shuffle_pallas.1} parent=43 // loop_header
                %s181 = sphi 0, %s185
                %p182 = scmp.ge.s32.totalorder %s181, 1
                %s186 = sphi %s164, %s164
                %s187 = sphi %s172, %s172
              $region47: #{pixel_shuffle_pallas.1} parent=43 // loop_header_branch
                %184 = sbr.rel (%p182) target = $region51
              $region48: #{pixel_shuffle_pallas.1} parent=43 // loop_body
                %v188 = vld [vmem:[%s186] sm:$0xff]
                %189 = vst [vmem:[%s187] sm:$0xff] %v188
                %v190 = vld [vmem:[%s186 + $0x8] sm:$0xff]
                %191 = vst [vmem:[%s187 + $0x8] sm:$0xff] %v190
                %v192 = vld [vmem:[%s186 + $0x10] sm:$0xff]
                %193 = vst [vmem:[%s187 + $0x20] sm:$0xff] %v192
                %v194 = vld [vmem:[%s186 + $0x18] sm:$0xff]
                %195 = vst [vmem:[%s187 + $0x28] sm:$0xff] %v194
              $region49: #{pixel_shuffle_pallas.1} parent=43 // loop_footer
                %s185 = sadd.s32 1, %s181
              $region50: #{pixel_shuffle_pallas.1} parent=43 // loop_footer_branch
                %180 = sbr.rel target = $region46
              $region51: #{pixel_shuffle_pallas.1} parent=43 // loop_exit
                _
            $region44: #{pixel_shuffle_pallas.1} parent=35 // pred_fallthru
              _
          $region36: #{pixel_shuffle_pallas.1} parent=31 // pred_fallthru
            _
          %216 = vnop
        $region32: #{pixel_shuffle_pallas.1} parent=23 // pred_fallthru
          _
      $region24: #{pixel_shuffle_pallas.1} parent=5 // pred_fallthru
        _
      %p217 = scmp.le.s32.totalorder 2, %s10
      // Predicated region
      $region67: #{pixel_shuffle_pallas.1} parent=5 // pred_check
        %p218 = pneg %p217
      $region68: #{pixel_shuffle_pallas.1} parent=5 // pred_check_branch
        %220 = sbr.rel (%p218) target = $region70
      $region69: #{pixel_shuffle_pallas.1} parent=5 // pred_region
        %s221 = ssub.s32 %s10, 2
        // Predicated region
        $region71: #{pixel_shuffle_pallas.1} parent=69 // pred_check
          %p222 = pneg %p81
        $region72: #{pixel_shuffle_pallas.1} parent=69 // pred_check_branch
          %224 = sbr.rel (%p222) target = $region74
        $region73: #{pixel_shuffle_pallas.1} parent=69 // pred_region
          %s225 = sand.u32 %s66, 1
          %s226 = sand.u32 %s66, 1
          %s227 = smul.addr %s226, 32
          %s228 = scalar_lea.vmem [#allocation4], %s227
        $region74: #{pixel_shuffle_pallas.1} parent=69 // pred_fallthru
          _
      $region70: #{pixel_shuffle_pallas.1} parent=5 // pred_fallthru
        _
    $region6: #{pixel_shuffle_pallas.1} parent=1 // loop_footer
      %s14 = sadd.s32 1, %s10
    $region7: #{pixel_shuffle_pallas.1} parent=1 // loop_footer_branch
      %9 = sbr.rel target = $region3
    $region8: #{pixel_shuffle_pallas.1} parent=1 // loop_exit
      _
    %229 = vsyncpa [#allocation3], 1
    %s230 = scalar_lea.sflag [#allocation3], 1
    %231 = vsyncpa %s230, 1

</llo_original>
